<compile_context>
chip_gen: v5e
topology: v5e:2x2
jax: 0.10.0
libtpu: 0.0.40
codegen_flags: <defaults>
</compile_context>

<pallas_src>
import jax
import jax.numpy as jnp
from jax.experimental import pallas as pl
from jax.experimental.pallas import tpu as pltpu


# ------------------------------ kernels ---------------------------------------

def _radix_softmax_kernel(x_ref, o_ref):
    """Softmax over the radix axis for one (batch, cardinality-group) slab.

    Block shape (1, radix, k): radix on the sublane axis, k on the lane axis.
    """
    x = x_ref[0].astype(jnp.float32)               # (radix, k)
    m = jnp.max(x, axis=0, keepdims=True)          # (1, k)  sublane reduce
    e = jnp.exp(x - m)                             # EUP
    s = jnp.sum(e, axis=0, keepdims=True)          # (1, k)
    o_ref[0] = (e / s).astype(o_ref.dtype)


def _sigmoid_kernel(x_ref, o_ref):
    """radix == 1 branch: plain sigmoid."""
    x = x_ref[...].astype(jnp.float32)
    o_ref[...] = (1.0 / (1.0 + jnp.exp(-x))).astype(o_ref.dtype)


# ------------------------------ wrapper ----------------------------------------

def radix_softmax(x, *, radix, cardinality):
    """Pallas equivalent of RadixSoftmax.forward; accepts (B, C) or (B, C, 1, 1)."""
    batch = x.shape[0]
    x2 = x.reshape(batch, -1)                      # == torch's .view(batch, ...)
    feat = x2.shape[1]

    if radix <= 1:
        return pl.pallas_call(
            _sigmoid_kernel,
            out_shape=jax.ShapeDtypeStruct((batch, feat), x2.dtype),
            grid=(1,),
            in_specs=[pl.BlockSpec((batch, feat), lambda i: (0, 0))],
            out_specs=pl.BlockSpec((batch, feat), lambda i: (0, 0)),
        )(x2)

    assert feat % (radix * cardinality) == 0
    k = feat // (radix * cardinality)
    groups = batch * cardinality

    # (B, feat) -> (B*cardinality, radix, k): contiguous, free reshape.
    x3 = x2.reshape(groups, radix, k)

    y3 = pl.pallas_call(
        _radix_softmax_kernel,
        out_shape=jax.ShapeDtypeStruct((groups, radix, k), x2.dtype),
        grid=(groups,),
        in_specs=[pl.BlockSpec((1, radix, k), lambda g: (g, 0, 0))],
        out_specs=pl.BlockSpec((1, radix, k), lambda g: (g, 0, 0)),
        compiler_params=pltpu.CompilerParams(
            dimension_semantics=("parallel",)),
    )(x3)

    # torch: view(B, card, radix, k).transpose(1, 2) -> softmax(dim=1) -> reshape(B, -1).
    # Softmax over radix was applied above; reproduce the transposed output
    # ordering here (identity permutation when cardinality == 1).
    y4 = y3.reshape(batch, cardinality, radix, k)
    return jnp.transpose(y4, (0, 2, 1, 3)).reshape(batch, -1)


# --------------------------- pure-JAX reference ---------------------------------

def radix_softmax_ref(x, *, radix, cardinality):
    batch = x.shape[0]
    x2 = x.reshape(batch, -1)
    if radix > 1:
        xr = x2.reshape(batch, cardinality, radix, -1)
        xr = jnp.swapaxes(xr, 1, 2)
        xr = jax.nn.softmax(xr, axis=1)
        return xr.reshape(batch, -1)
    return jax.nn.sigmoid(x2)


# --------------------------------- main -----------------------------------------

if __name__ == "__main__":
    key = jax.random.PRNGKey(0)

    # radix > 1 path (scanet default: radix=4, cardinality=1); k=128 -> lane-dense.
    RADIX, CARD, K = 4, 1, 128
    B = 2
    C = RADIX * CARD * K
    x = jax.random.normal(key, (B, C, 1, 1), jnp.float32)   # fc2-style NCHW input

    fwd = jax.jit(lambda t: radix_softmax(t, radix=RADIX, cardinality=CARD))
    out = jax.block_until_ready(fwd(x))
    ref = radix_softmax_ref(x, radix=RADIX, cardinality=CARD)
    assert out.shape == (B, C)
    assert bool(jnp.all(jnp.isfinite(out)))
    assert bool(jnp.allclose(out, ref, atol=1e-6, rtol=1e-5)), "radix>1 mismatch"

    # radix == 1 path (sigmoid branch of the module).
    x1 = jax.random.normal(jax.random.fold_in(key, 1), (B, 128, 1, 1), jnp.float32)
    fwd1 = jax.jit(lambda t: radix_softmax(t, radix=1, cardinality=1))
    out1 = jax.block_until_ready(fwd1(x1))
    ref1 = radix_softmax_ref(x1, radix=1, cardinality=1)
    assert bool(jnp.allclose(out1, ref1, atol=1e-6, rtol=1e-5)), "radix==1 mismatch"

    print("KERNEL_OK")
</pallas_src>

<mosaic_0001>
module attributes {stable_mosaic.version = 11 : i64} {
  func.func @_radix_softmax_kernel(%arg0: i32, %arg1: memref<1x4x128xf32, #tpu.memory_space<vmem>>, %arg2: memref<1x4x128xf32, #tpu.memory_space<vmem>>) attributes {dimension_semantics = [#tpu.dimension_semantics<parallel>], iteration_bounds = array<i64: 2>, scalar_prefetch = 0 : i64, scratch_operands = 0 : i64, tpu.core_type = #tpu.core_type<tc>, window_params = [{transform_indices = @transform_0, window_bounds = array<i64: 1, 4, 128>}, {transform_indices = @transform_1, window_bounds = array<i64: 1, 4, 128>}]} {
    %c0 = arith.constant 0 : index
    %c0_0 = arith.constant 0 : index
    %c0_1 = arith.constant 0 : index
    %0 = vector.load %arg1[%c0, %c0_0, %c0_1] : memref<1x4x128xf32, #tpu.memory_space<vmem>>, vector<1x4x128xf32>
    %1 = vector.shape_cast %0 : vector<1x4x128xf32> to vector<4x128xf32>
    %cst = arith.constant dense<0xFF800000> : vector<128xf32>
    %2 = vector.multi_reduction <maximumf>, %1, %cst [0] : vector<4x128xf32> to vector<128xf32>
    %3 = vector.shape_cast %2 : vector<128xf32> to vector<1x128xf32>
    %4 = vector.broadcast %3 : vector<1x128xf32> to vector<4x128xf32>
    %5 = arith.subf %1, %4 : vector<4x128xf32>
    %6 = math.exp %5 : vector<4x128xf32>
    %cst_2 = arith.constant dense<0.000000e+00> : vector<128xf32>
    %7 = vector.multi_reduction <add>, %6, %cst_2 [0] : vector<4x128xf32> to vector<128xf32>
    %8 = vector.shape_cast %7 : vector<128xf32> to vector<1x128xf32>
    %9 = vector.broadcast %8 : vector<1x128xf32> to vector<4x128xf32>
    %10 = arith.divf %6, %9 : vector<4x128xf32>
    %c0_3 = arith.constant 0 : index
    %c0_4 = arith.constant 0 : index
    %c0_5 = arith.constant 0 : index
    %11 = vector.load %arg2[%c0_3, %c0_4, %c0_5] : memref<1x4x128xf32, #tpu.memory_space<vmem>>, vector<1x4x128xf32>
    %12 = vector.shape_cast %11 : vector<1x4x128xf32> to vector<4x128xf32>
    %13 = vector.shape_cast %10 : vector<4x128xf32> to vector<1x4x128xf32>
    tpu.vector_store %arg2[%c0_3, %c0_4, %c0_5], %13 {strides = array<i32>} : memref<1x4x128xf32, #tpu.memory_space<vmem>>, vector<1x4x128xf32>,
    return
  }
  func.func @transform_0(%arg0: i32) -> (i32, i32, i32) {
    %c0_i32 = arith.constant 0 : i32
    %c0_i32_0 = arith.constant 0 : i32
    %c0_i32_1 = arith.constant 0 : i32
    return %arg0, %c0_i32, %c0_i32_0 : i32, i32, i32
  }
  func.func @transform_1(%arg0: i32) -> (i32, i32, i32) {
    %c0_i32 = arith.constant 0 : i32
    %c0_i32_0 = arith.constant 0 : i32
    %c0_i32_1 = arith.constant 0 : i32
    return %arg0, %c0_i32, %c0_i32_0 : i32, i32, i32
  }
}

</mosaic_0001>

<llo_original>
// kernel: _lambda_.1
$region0: #{_lambda_.1}
  #allocation0 [shape = 'u32[]', space=smem, size = 0x4, offset = 0x4, fixed_abs, tag = 'smem constant byte address 0x4 - core index']
  #allocation1 [shape = 'u32[72,128]{1,0:T(1,128)}', space=vmem, size = 0x9000, scoped, tag = 'internal scratch']
  %s0 = inlined_call_operand.hbm [shape: f32[2,4,128], index: 0, kind: input, shape index: {}]
  %s1 = inlined_call_operand.vmem [shape: f32[2,4,128], index: 1, kind: output, shape index: {}]
  %s2 = sld [smem:[#allocation0]]
  $region41: #{_lambda_.1} parent=0
    _
  %s4 = ssub.s32 1, %s2
  %s5 = scalar_select 0, %s4, %s2
  $region1: #{_lambda_.1} parent=0
    #allocation2 [shape = 'u8[4096]{0}', space=vmem, size = 0x1000, scoped, tag = 'input window, operand 0']
    #allocation3 [shape = 's32[2]{0}', space=sflag, size = 0x8, scoped, tag = 'scoped memory for _lambda_.1']
    %6 = vsyncpa [#allocation3], 0
    %s7 = scalar_lea.sflag [#allocation3], 1
    %8 = vsyncpa %s7, 0
    loop: start=0, step=1, limit=4
    $region2: #{_lambda_.1} parent=1 // loop_pre_header
      _
    $region3: #{_lambda_.1} parent=1 // loop_header
      %s10 = sphi 0, %s14
      %p11 = scmp.ge.s32.totalorder %s10, 4
      %s20 = sphi 0, %s22
      %s23 = sphi 0, %s20
      %s24 = sphi 0, %s23
      %s40 = sphi 0, %s24
      %s46 = sphi 0, %s48
      %s49 = sphi 0, %s46
      %s50 = sphi 0, %s49
      %s66 = sphi 0, %s50
    $region4: #{_lambda_.1} parent=1 // loop_header_branch
      %13 = sbr.rel (%p11) target = $region8
    $region5: #{_lambda_.1} parent=1 // loop_body
      %s15 = ssub.s32 %s10, 1
      %s16 = ssub.s32 %s10, 2
      %s17 = sadd.s32 %s10, 1
      %s18 = ssub.s32 %s10, %s17
      %p19 = scmp.eq.s32.totalorder %s18, 0
      %s21 = sadd.s32 %s20, 1
      %s22 = scalar_select %p19, %s20, %s21
      %p25 = pneg %p19
      %p26 = scmp.eq.s32.totalorder %s10, 1
      %p27 = por %p25, %p26
      %p28 = scmp.ne.s32.totalorder %s20, %s23
      %p29 = scmp.eq.s32.totalorder %s10, 0
      %p30 = por %p28, %p29
      %p31 = scmp.ne.s32.totalorder %s20, %s23
      %p32 = scmp.eq.s32.totalorder %s15, 1
      %p33 = por %p31, %p32
      %p34 = scmp.ne.s32.totalorder %s23, %s24
      %p35 = scmp.eq.s32.totalorder %s15, 0
      %p36 = por %p34, %p35
      %p37 = scmp.ne.s32.totalorder %s23, %s24
      %p38 = scmp.eq.s32.totalorder %s16, 1
      %p39 = por %p37, %p38
      %p41 = scmp.ne.s32.totalorder %s24, %s40
      %p42 = scmp.eq.s32.totalorder %s16, 0
      %p43 = por %p41, %p42
      %s44 = ssub.s32 %s10, %s17
      %p45 = scmp.eq.s32.totalorder %s44, 0
      %s47 = sadd.s32 %s46, 1
      %s48 = scalar_select %p45, %s46, %s47
      %p51 = pneg %p45
      %p52 = scmp.eq.s32.totalorder %s10, 1
      %p53 = por %p51, %p52
      %p54 = scmp.ne.s32.totalorder %s46, %s49
      %p55 = scmp.eq.s32.totalorder %s10, 0
      %p56 = por %p54, %p55
      %p57 = scmp.ne.s32.totalorder %s46, %s49
      %p58 = scmp.eq.s32.totalorder %s15, 1
      %p59 = por %p57, %p58
      %p60 = scmp.ne.s32.totalorder %s49, %s50
      %p61 = scmp.eq.s32.totalorder %s15, 0
      %p62 = por %p60, %p61
      %p63 = scmp.ne.s32.totalorder %s49, %s50
      %p64 = scmp.eq.s32.totalorder %s16, 1
      %p65 = por %p63, %p64
      %p67 = scmp.ne.s32.totalorder %s50, %s66
      %p68 = scmp.eq.s32.totalorder %s16, 0
      %p69 = por %p67, %p68
      %p70 = scmp.le.s32.totalorder 1, %s10
      %p71 = scmp.lt.s32.totalorder %s10, 3
      %p72 = pnand %p70, %p71
      %p73 = pneg %p72
      // Predicated region
      $region9: #{_lambda_.1} parent=5 // pred_check
        _
      $region10: #{_lambda_.1} parent=5 // pred_check_branch
        %75 = sbr.rel (%p72) target = $region12
      $region11: #{_lambda_.1} parent=5 // pred_region
        %s76 = ssub.s32 %s10, 1
      $region12: #{_lambda_.1} parent=5 // pred_fallthru
        _
      %p77 = scmp.lt.s32.totalorder %s10, 2
      // Predicated region
      $region13: #{_lambda_.1} parent=5 // pred_check
        %p78 = pneg %p77
      $region14: #{_lambda_.1} parent=5 // pred_check_branch
        %80 = sbr.rel (%p78) target = $region16
      $region15: #{_lambda_.1} parent=5 // pred_region
        // Predicated region
        $region17: #{_lambda_.1} parent=15 // pred_check
          %p81 = pneg %p30
        $region18: #{_lambda_.1} parent=15 // pred_check_branch
          %83 = sbr.rel (%p81) target = $region20
        $region19: #{_lambda_.1} parent=15 // pred_region
          %s84 = sand.u32 %s20, 1
          %s85 = scalar_lea.sflag [#allocation3], %s84
          %s86 = sand.u32 %s20, 1
          %s87 = smul.addr %s86, 4
          %s88 = scalar_lea.vmem [#allocation2], %s87
          %90 = vsyncadd %s85, 0
          %s91 = smul.addr %s10, 4
          %s92 = scalar_lea.hbm %s0, %s91
          %s94 = sshll.u32 %s92, 4
          %s95 = int_to_ptr.hbm [resolvable:$true] %s94
          %s96 = sshll.u32 %s88, 4
          %s97 = int_to_ptr.vmem [resolvable:$true] %s96
          %99 = dma.hbm_to_vmem [thread:$0]  %s95, 64, %s97, %s85
        $region20: #{_lambda_.1} parent=15 // pred_fallthru
          _
      $region16: #{_lambda_.1} parent=5 // pred_fallthru
        _
      %p100 = scmp.le.s32.totalorder 1, %s10
      %p101 = scmp.lt.s32.totalorder %s10, 3
      %p102 = pnand %p100, %p101
      %p103 = pneg %p102
      // Predicated region
      $region21: #{_lambda_.1} parent=5 // pred_check
        _
      $region22: #{_lambda_.1} parent=5 // pred_check_branch
        %105 = sbr.rel (%p102) target = $region24
      $region23: #{_lambda_.1} parent=5 // pred_region
        %s106 = ssub.s32 %s10, 1
        %s107 = sand.u32 %s23, 1
        %s108 = scalar_lea.sflag [#allocation3], %s107
        %s109 = sand.u32 %s23, 1
        %s110 = smul.addr %s109, 4
        %s111 = scalar_lea.vmem [#allocation2], %s110
        // Predicated region
        $region25: #{_lambda_.1} parent=23 // pred_check
          %p112 = pneg %p36
        $region26: #{_lambda_.1} parent=23 // pred_check_branch
          %114 = sbr.rel (%p112) target = $region28
        $region27: #{_lambda_.1} parent=23 // pred_region
          %116 = dma.done %s108, 64
        $region28: #{_lambda_.1} parent=23 // pred_fallthru
          _
        %s117 = sand.u32 %s23, 1
        %s118 = scalar_lea.sflag [#allocation3], %s117
        %s119 = sand.u32 %s23, 1
        %s120 = smul.addr %s119, 4
        %s121 = scalar_lea.vmem [#allocation2], %s120
        %p122 = pneg %p36
        %p123 = pneg %p33
        %p124 = pneg %p62
        %p125 = pneg %p59
        %p126 = scmp.lt.s32.totalorder %s15, 1
        %s127 = scalar_select %p126, %s15, 1
        %s128 = smul.addr %s127, 4
        %s129 = scalar_lea.vmem %s1, %s128
        %p130 = scmp.lt.s32.totalorder %s15, 1
        %s131 = scalar_select %p130, %s15, 1
        %s132 = smul.addr %s131, 4
        %s133 = scalar_lea.vmem %s1, %s132
        %v134 = vld [vmem:[%s111] sm:$0xf]
        %vm135 = vcmask 1043456
        %v136 = vsel %vm135, %v134, -inf
        %v137 = vrot.slane %v136, 4
        %v138 = vmax.f32 %v136, %v137
        %v139 = vrot.slane %v138, 2
        %v140 = vmax.f32 %v138, %v139
        %v141 = vrot.slane %v140, 1
        %v142 = vmax.f32 %v140, %v141
        %v143 = vsub.f32 %v134, %v142
        %v144 = vmul.f32 %v143, 1.442695
        %v145 = vpow.pop %v144
        %v146 = vsel %vm135, %v145, 0.0
        %v147 = vrot.slane %v146, 4
        %v148 = vadd.f32 %v146, %v147
        %v149 = vrot.slane %v148, 2
        %v150 = vadd.f32 %v148, %v149
        %v151 = vrot.slane %v150, 1
        %v152 = vadd.f32 %v150, %v151
        %v153 = vrcp.pop %v152
        %v154 = vmul.f32 %v152, %v153
        %v155 = vsub.f32 1.0, %v154
        %v156 = vmul.f32 %v153, %v155
        %v157 = vadd.f32 %v153, %v156
        %vm158 = vweird.f32 %v152
        %vm159 = vweird.f32 %v153
        %vm160 = vmor %vm158, %vm159
        %v161 = vsel %vm160, %v153, %v157
        %v162 = vand.u32 2147483647, %v152
        %vm163 = vcmp.eq.f32.partialorder %v162, 8.507059e+37
        %v164 = vand.u32 %v152, 2147483648
        %v165 = vor.u32 1.1754944e-38, %v164
        %v166 = vsel %vm163, %v165, %v161
        %v167 = vmul.f32 %v145, %v166
        %168 = vst [vmem:[%s133] sm:$0xf] %v167
        %p169 = scmp.lt.s32.totalorder %s15, 1
        %s170 = scalar_select %p169, %s15, 1
        %s171 = smul.addr %s170, 4
        %s172 = scalar_lea.vmem %s1, %s171
        // Predicated region
        $region29: #{_lambda_.1} parent=23 // pred_check
          %p173 = pneg %p59
        $region30: #{_lambda_.1} parent=23 // pred_check_branch
          %175 = sbr.rel (%p173) target = $region32
        $region31: #{_lambda_.1} parent=23 // pred_region
          _
        $region32: #{_lambda_.1} parent=23 // pred_fallthru
          _
      $region24: #{_lambda_.1} parent=5 // pred_fallthru
        _
      %p176 = scmp.le.s32.totalorder 2, %s10
      // Predicated region
      $region33: #{_lambda_.1} parent=5 // pred_check
        %p177 = pneg %p176
      $region34: #{_lambda_.1} parent=5 // pred_check_branch
        %179 = sbr.rel (%p177) target = $region36
      $region35: #{_lambda_.1} parent=5 // pred_region
        %s180 = ssub.s32 %s10, 2
        // Predicated region
        $region37: #{_lambda_.1} parent=35 // pred_check
          %p181 = pneg %p65
        $region38: #{_lambda_.1} parent=35 // pred_check_branch
          %183 = sbr.rel (%p181) target = $region40
        $region39: #{_lambda_.1} parent=35 // pred_region
          %p184 = scmp.lt.s32.totalorder %s16, 1
          %s185 = scalar_select %p184, %s16, 1
          %s186 = smul.addr %s185, 4
          %s187 = scalar_lea.vmem %s1, %s186
        $region40: #{_lambda_.1} parent=35 // pred_fallthru
          _
      $region36: #{_lambda_.1} parent=5 // pred_fallthru
        _
    $region6: #{_lambda_.1} parent=1 // loop_footer
      %s14 = sadd.s32 1, %s10
    $region7: #{_lambda_.1} parent=1 // loop_footer_branch
      %9 = sbr.rel target = $region3
    $region8: #{_lambda_.1} parent=1 // loop_exit
      _
    %188 = vsyncpa [#allocation3], 1
    %s189 = scalar_lea.sflag [#allocation3], 1
    %190 = vsyncpa %s189, 1

</llo_original>
